<compile_context>
chip_gen: v6e
topology: v6e:2x2x1
jax: 0.10.0
libtpu: 0.0.40
codegen_flags: <defaults>
</compile_context>

<pallas_src>
import functools
import math

import jax
import jax.numpy as jnp
from jax.experimental import pallas as pl
from jax.experimental.pallas import tpu as pltpu

_LANE = 128


# ---------------------------------------------------------------------------
# Production-preferred single-id path (no kernel launch): kept as reference.
# ---------------------------------------------------------------------------
def prompt_pool_forward_reference(pool: jax.Array, prompt_id) -> jax.Array:
    pid = jnp.clip(jnp.asarray(prompt_id, jnp.int32), 0, pool.shape[0] - 1)
    return jax.lax.dynamic_index_in_dim(pool, pid, axis=0, keepdims=False)


# ---------------------------------------------------------------------------
# Single-id lookup kernel: one direct HBM->HBM DMA of the selected (M, E)
# prompt.  Pool and output never transit VMEM/vregs.
# ---------------------------------------------------------------------------
def _select_prompt_kernel(id_ref, pool_hbm, out_hbm, sem):
    copy = pltpu.make_async_copy(pool_hbm.at[id_ref[0]], out_hbm, sem)
    copy.start()
    copy.wait()


def prompt_pool_forward(pool: jax.Array, prompt_id) -> jax.Array:
    """Equivalent of PromptPool.forward(id): returns pool[id], shape (M, E)."""
    T, M, E = pool.shape
    itemsize = jnp.dtype(pool.dtype).itemsize
    # Clamp so a bad id can never drive an out-of-bounds DMA.
    id_arr = jnp.clip(jnp.asarray(prompt_id, jnp.int32), 0, T - 1).reshape((1,))
    return pl.pallas_call(
        _select_prompt_kernel,
        out_shape=jax.ShapeDtypeStruct((M, E), pool.dtype),
        grid_spec=pltpu.PrefetchScalarGridSpec(
            num_scalar_prefetch=1,
            grid=(1,),
            in_specs=[pl.BlockSpec(memory_space=pl.ANY)],   # pool stays in HBM
            out_specs=pl.BlockSpec(memory_space=pl.ANY),    # written by the DMA
            scratch_shapes=[pltpu.SemaphoreType.DMA(())],   # shaped (stable) form
        ),
        cost_estimate=pl.CostEstimate(
            flops=0, transcendentals=0, bytes_accessed=2 * M * E * itemsize
        ),
    )(id_arr, pool)


# ---------------------------------------------------------------------------
# Batched lookup: pool is VMEM-resident (loaded once), each grid step gathers
# G ids from it with dynamic first-axis indexing and writes one lane-dense
# (G, M, E) output block.
# ---------------------------------------------------------------------------
def _gather_prompts_kernel(ids_ref, pool_ref, out_ref, *, ids_per_step):
    base = pl.program_id(0) * ids_per_step
    # Static unroll over the G ids handled this step; each is a (M, E) copy
    # from the VMEM-resident pool (repeated ids cost nothing extra in HBM).
    for g in range(ids_per_step):
        out_ref[g] = pool_ref[ids_ref[base + g]]


def prompt_pool_forward_batched(
    pool: jax.Array, prompt_ids, ids_per_step: int = 8
) -> jax.Array:
    """Returns pool[ids] of shape (B, M, E) for an int vector of task ids."""
    T, M, E = pool.shape
    itemsize = jnp.dtype(pool.dtype).itemsize

    # Keep the output last dim lane-dense (multiple of 128) so stores are
    # unmasked vst.  (No-op for E=128 / the module default 768; ideally the
    # pool would be padded once at init instead of per call.)
    E_pad = ((E + _LANE - 1) // _LANE) * _LANE
    pool_p = pool if E_pad == E else jnp.pad(pool, ((0, 0), (0, 0), (0, E_pad - E)))

    ids = jnp.clip(jnp.asarray(prompt_ids, jnp.int32).reshape(-1), 0, T - 1)
    B = ids.shape[0]
    G = min(ids_per_step, B)
    num_steps = (B + G - 1) // G
    B_pad = num_steps * G
    if B_pad != B:
        ids = jnp.pad(ids, (0, B_pad - B))  # pad with id 0 (valid); sliced off below

    out = pl.pallas_call(
        functools.partial(_gather_prompts_kernel, ids_per_step=G),
        out_shape=jax.ShapeDtypeStruct((B_pad, M, E_pad), pool.dtype),
        grid_spec=pltpu.PrefetchScalarGridSpec(
            num_scalar_prefetch=1,
            grid=(num_steps,),
            in_specs=[
                # Constant block index across the grid => the whole pool is
                # DMA'd HBM->VMEM once and stays resident (T*M*E bytes total,
                # not B*M*E).
                pl.BlockSpec((T, M, E_pad), lambda i, ids_ref: (0, 0, 0)),
            ],
            out_specs=pl.BlockSpec((G, M, E_pad), lambda i, ids_ref: (i, 0, 0)),
        ),
        compiler_params=pltpu.CompilerParams(
            # Megacore sharding is not a win at these per-step sizes.
            dimension_semantics=("arbitrary",),
        ),
        cost_estimate=pl.CostEstimate(
            flops=0,
            transcendentals=0,
            bytes_accessed=(T + B_pad) * M * E_pad * itemsize,
        ),
    )(ids, pool_p)

    if B_pad != B:
        out = out[:B]
    if E_pad != E:
        out = out[..., :E]
    return out


# ---------------------------------------------------------------------------
# Deterministic re-implementation of PromptPool.__init__.
# ---------------------------------------------------------------------------
def init_prompt_pool(
    key: jax.Array,
    prompt_size: int = 8,
    embedding_size: int = 128,
    current_update_id: int = 3,
    dtype=jnp.float32,   # use jnp.bfloat16 if the consumer runs bf16
) -> jax.Array:
    """kaiming_uniform_(a=sqrt(5)) per prompt:
    fan_in = embedding_size
    gain   = sqrt(2 / (1 + a^2)) = sqrt(1/3)
    bound  = gain * sqrt(3 / fan_in) = 1 / sqrt(fan_in)
    """
    a = math.sqrt(5.0)
    gain = math.sqrt(2.0 / (1.0 + a * a))
    bound = gain * math.sqrt(3.0 / embedding_size)
    prompts = []
    for task_id in range(current_update_id):
        k = jax.random.fold_in(key, task_id)
        prompts.append(
            jax.random.uniform(
                k,
                (prompt_size, embedding_size),
                dtype=dtype,
                minval=-bound,
                maxval=bound,
            )
        )
    return jnp.stack(prompts, axis=0)  # (T, M, E)


if __name__ == "__main__":
    key = jax.random.PRNGKey(0)

    prompt_size = 8       # M (module default is 10; small shape here)
    embedding_size = 128  # E (module default is 768; small shape here)
    num_tasks = 3         # current_update_id

    pool = init_prompt_pool(
        key,
        prompt_size=prompt_size,
        embedding_size=embedding_size,
        current_update_id=num_tasks,
    )

    # --- single-id forward (module semantics: forward(id) -> (M, E)) --------
    task_id = 1
    out = jax.block_until_ready(prompt_pool_forward(pool, task_id))
    ref = prompt_pool_forward_reference(pool, task_id)
    assert out.shape == (prompt_size, embedding_size)
    assert out.dtype == pool.dtype
    assert jnp.array_equal(out, ref), "single-id Pallas prompt selection mismatch"

    # --- batched lookup (VMEM-resident pool, G ids per grid step) -----------
    # B=10 with repeated ids exercises both the resident-pool reuse and the
    # pad-to-multiple-of-G path (G=8 -> 2 grid steps, 16 padded rows).
    ids = jnp.array([2, 0, 1, 1, 2, 0, 0, 1, 2, 1], dtype=jnp.int32)
    out_b = jax.block_until_ready(prompt_pool_forward_batched(pool, ids))
    ref_b = pool[ids]
    assert out_b.shape == (ids.shape[0], prompt_size, embedding_size)
    assert out_b.dtype == pool.dtype
    assert jnp.array_equal(out_b, ref_b), "batched Pallas prompt gather mismatch"

    # TODO(synk): increment_task() / get_params() mutate & expose the parameter
    # dict (training-time state management), not a forward pass; left to plain
    # JAX/host code.  For production single-id use, fuse the lookup into the
    # consumer kernel via a scalar-prefetched id in its pool index_map.

    print("KERNEL_OK")
</pallas_src>

<mosaic_0001>
module attributes {stable_mosaic.version = 11 : i64} {
  func.func @_select_prompt_kernel(%arg0: i32, %arg1: memref<1xi32, #tpu.memory_space<smem>>, %arg2: memref<3x8x128xf32, #tpu.memory_space<any>>, %arg3: memref<8x128xf32, #tpu.memory_space<any>>, %arg4: memref<!tpu.dma_semaphore, #tpu.memory_space<semaphore_mem>>) attributes {dimension_semantics = [#tpu.dimension_semantics<arbitrary>], iteration_bounds = array<i64: 1>, scalar_prefetch = 1 : i64, scratch_operands = 1 : i64, tpu.core_type = #tpu.core_type<tc>, window_params = [{}, {}]} {
    %c0 = arith.constant 0 : index
    %0 = memref.load %arg1[%c0] : memref<1xi32, #tpu.memory_space<smem>>
    %c0_i32 = arith.constant 0 : i32
    %c0_i32_0 = arith.constant 0 : i32
    %1 = tpu.memref_slice %arg2[%0, %c0_i32, %c0_i32_0] : memref<3x8x128xf32, #tpu.memory_space<any>> -> memref<1x8x128xf32, #tpu.memory_space<any>>
    %2 = tpu.memref_squeeze %1 : memref<1x8x128xf32, #tpu.memory_space<any>> -> memref<8x128xf32, #tpu.memory_space<any>>
    tpu.enqueue_dma source(%2 : memref<8x128xf32, #tpu.memory_space<any>>) target(%arg3 : memref<8x128xf32, #tpu.memory_space<any>>) target_semaphore(%arg4 : memref<!tpu.dma_semaphore, #tpu.memory_space<semaphore_mem>>)
    %c0_i32_1 = arith.constant 0 : i32
    %c0_i32_2 = arith.constant 0 : i32
    %3 = tpu.memref_slice %arg2[%0, %c0_i32_1, %c0_i32_2] : memref<3x8x128xf32, #tpu.memory_space<any>> -> memref<1x8x128xf32, #tpu.memory_space<any>>
    %4 = tpu.memref_squeeze %3 : memref<1x8x128xf32, #tpu.memory_space<any>> -> memref<8x128xf32, #tpu.memory_space<any>>
    tpu.wait_dma2 semaphore(%arg4 : memref<!tpu.dma_semaphore, #tpu.memory_space<semaphore_mem>>) src(%4 : memref<8x128xf32, #tpu.memory_space<any>>) dst(%arg3 : memref<8x128xf32, #tpu.memory_space<any>>)
    return
  }
}

</mosaic_0001>

<llo_original>
// kernel: tpu_custom_call.1
$region0: #{tpu_custom_call.1}
  #allocation0 [shape = 'u32[]', space=smem, size = 0x4, offset = 0x4, fixed_abs, tag = 'smem constant byte address 0x4 - core index']
  #allocation1 [shape = 'u32[144,128]{1,0:T(1,128)}', space=vmem, size = 0x12000, scoped, tag = 'internal scratch']
  #allocation2 [shape = 's32[1]{0}', space=sflag, size = 0x4, scoped, tag = 'scratch operand']
  #allocation3 [shape = 's32[1]{0}', space=sflag, size = 0x4, scoped, tag = 'scoped memory for tpu_custom_call.1']
  #allocation4 [shape = 's32[1]{0:T(128)S(6)}', space=smem, size = 0x200, scoped, tag = 'prefetched SMEM operand 0']
  #allocation5 [shape = 's32[]', space=sflag, size = 0x4, offset = 0, fixed_abs, tag = 'sflag constant byte address 0x0 - dummy sync flag']
  #allocation6 [shape = 'u32[0]{0}', space=smem, size = 0, offset = 0, fixed_abs, tag = 'smem constant byte address 0x0 - null']
  %s0 = inlined_call_operand.<no memory space> [shape: s32[1], index: 0, kind: input, shape index: {}]
  %s1 = inlined_call_operand.hbm [shape: f32[3,8,128], index: 1, kind: input, shape index: {}]
  %s2 = inlined_call_operand.hbm [shape: f32[8,128], index: 2, kind: output, shape index: {}]
  %s3 = sld [smem:[#allocation0]]
  $region2: #{tpu_custom_call.1} parent=0
    _
  %s5 = ssub.s32 1, %s3
  %s6 = scalar_select 0, %s5, %s3
  %7 = sst [smem:[#allocation4]] %s0
  %s8 = sld [smem:[#allocation4]]
  %s9 = smul.u32 %s8, 8
  %s10 = smul.addr %s9, 16
  %s11 = scalar_lea.hbm %s1, %s10
  %s13 = sshll.u32 1, 14
  %s14 = sxor.u32 4294967295, %s13
  %18 = dma.general %s11, 128, %s2, [#allocation2], 131072, [#allocation6], 0, 0
  %s19 = smul.u32 8, 1
  %s20 = sshll.u32 %s19, 4
  %21 = dma.done [#allocation2], %s20
  %22 = vsyncmov [#allocation2]
  %s23 = vpop.sfrf %22
  %p24 = scmp.eq.s32.totalorder %s23, 0
  %p25 = pneg %p24
  %27 = shalt.err (%p25)

</llo_original>
